<compile_context>
chip_gen: v6e
topology: v6e:2x2x1
jax: 0.10.0
libtpu: 0.0.40
codegen_flags: <defaults>
</compile_context>

<pallas_src>
import functools

import jax
import jax.numpy as jnp
from jax import lax
from jax.experimental import pallas as pl
from jax.experimental.pallas import tpu as pltpu


_DIMS = [28, 32, 64, 24, 12, 6, 1]
_LANE_CHUNK = 512          # inner compute chunk along the batch/lane axis


# ----------------------------- Pallas kernel ------------------------------

def _mlp_kernel(x_ref,
                w1_ref, b1_ref,
                w2_ref, b2_ref,
                w3_ref, b3_ref,
                w4_ref, b4_ref,
                w5_ref, b5_ref,
                w6_ref, b6_ref,
                o_ref, *, chunk, n_chunks):
    """Fused forward pass for one batch tile, processed in lane chunks.

    x_ref : (TB, 28) batch-major input tile.
    w1..w5: (out_i, in_i) PyTorch-layout weights; b1..b6: (out_i, 1).
    w6    : (6, 1) final-layer weight column.
    o_ref : (1, TB) lane-dense output tile (batch on the lane axis).
    """
    f32 = jnp.float32

    def dense_relu(h, w_ref, b_ref):
        y = jnp.dot(w_ref[...], h, preferred_element_type=f32)
        return jnp.maximum(y + b_ref[...], 0.0)

    def one_chunk(c, carry):
        start = pl.multiple_of(c * chunk, 128)
        xc = x_ref[pl.ds(start, chunk), :]                       # (chunk, 28)

        # Layer 1: contract the feature axis of both operands (q @ k.T
        # pattern) -> feature-major (32, chunk); batch on the lane axis, so
        # every subsequent op is lane-dense.
        h = lax.dot_general(w1_ref[...], xc,
                            (((1,), (1,)), ((), ())),
                            preferred_element_type=f32)
        h = jnp.maximum(h + b1_ref[...], 0.0)                    # (32, chunk)

        h = dense_relu(h, w2_ref, b2_ref)                        # (64, chunk)
        h = dense_relu(h, w3_ref, b3_ref)                        # (24, chunk)
        h = dense_relu(h, w4_ref, b4_ref)                        # (12, chunk)
        h = dense_relu(h, w5_ref, b5_ref)                        # (6,  chunk)

        # Final 6 -> 1 layer on the VPU: broadcast-multiply by the weight
        # column, reduce over the 6 sublanes; stays lane-dense as (1, chunk).
        y = jnp.sum(h * w6_ref[...], axis=0, keepdims=True) + b6_ref[...]
        o_ref[:, pl.ds(start, chunk)] = jax.nn.sigmoid(y).astype(o_ref.dtype)
        return carry

    lax.fori_loop(0, n_chunks, one_chunk, 0, unroll=True)


# ------------------------------ JAX wrapper -------------------------------

def model1_forward(x, params, *, batch_tile=4096):
    """x: (B, 28). params: list of (W, b) with W in PyTorch (out, in) layout."""
    B, in_dim = x.shape
    assert in_dim == _DIMS[0]
    assert batch_tile % _LANE_CHUNK == 0, \
        "batch_tile must be a multiple of the inner lane chunk (512)"

    x = x.astype(jnp.float32)

    # Tile selection: a multiple of 128 (lane width), rounded to a multiple of
    # the inner chunk when larger than one chunk, shrunk for tiny batches.
    if B >= batch_tile:
        tb = batch_tile
    else:
        tb = pl.cdiv(B, 128) * 128
        if tb > _LANE_CHUNK:
            tb = pl.cdiv(tb, _LANE_CHUNK) * _LANE_CHUNK
    chunk = min(_LANE_CHUNK, tb)
    n_chunks = tb // chunk
    assert tb % chunk == 0

    # No wrapper-side padding: Pallas clamps the ragged last input block and
    # masks the ragged output writeback.  Garbage rows in the tail block stay
    # confined to their own lanes (no op mixes batch lanes).
    grid = (pl.cdiv(B, tb),)

    # Flatten params: biases as (out, 1) columns so they broadcast over lanes;
    # the final weight as a (6, 1) column for the VPU head.
    flat_args = []
    n_layers = len(params)
    for i, (w, b) in enumerate(params):
        w = jnp.asarray(w, jnp.float32)
        b = jnp.asarray(b, jnp.float32)
        flat_args.append(w.reshape(-1, 1) if i == n_layers - 1 else w)
        flat_args.append(b.reshape(-1, 1))

    # Weights/biases (~20 KiB total) are grid-invariant: their block index is
    # always (0, 0), so Pallas fetches them once and keeps them VMEM-resident.
    def param_spec(a):
        return pl.BlockSpec(a.shape, lambda i: (0, 0))

    in_specs = [pl.BlockSpec((tb, in_dim), lambda i: (i, 0))]
    in_specs += [param_spec(a) for a in flat_args]
    out_specs = pl.BlockSpec((1, tb), lambda i: (0, i))

    # Advisory cost estimate for XLA's scheduler around the custom call.
    flops_per_row = 2 * sum(_DIMS[i] * _DIMS[i + 1] for i in range(len(_DIMS) - 1))
    param_bytes = 4 * sum(int(a.size) for a in flat_args)
    cost = pl.CostEstimate(
        flops=flops_per_row * B,
        transcendentals=B,                                # one exp per row (sigmoid)
        bytes_accessed=B * (in_dim + 1) * 4 + param_bytes)

    kernel = functools.partial(_mlp_kernel, chunk=chunk, n_chunks=n_chunks)

    out = pl.pallas_call(
        kernel,
        out_shape=jax.ShapeDtypeStruct((1, B), jnp.float32),
        grid_spec=pltpu.PrefetchScalarGridSpec(
            num_scalar_prefetch=0,
            grid=grid,
            in_specs=in_specs,
            out_specs=out_specs,
        ),
        compiler_params=pltpu.CompilerParams(
            dimension_semantics=("parallel",),
            # x block is lane-padded to (tb, 128) f32 in VMEM and
            # double-buffered; 32 MiB gives ample headroom for tb <= 16384
            # while staying within v7x's 64 MiB physical VMEM.
            vmem_limit_bytes=32 * 1024 * 1024),
        cost_estimate=cost,
    )(x, *flat_args)

    # (1, B) and (B, 1) share the same linear layout -> free reshape.
    return out.reshape(B, 1)


# --------------------------- parameter creation ----------------------------

def init_params(key):
    """Deterministic init with nn.Linear shapes: W (out, in), b (out,)."""
    params = []
    for i in range(len(_DIMS) - 1):
        fan_in, fan_out = _DIMS[i], _DIMS[i + 1]
        key, kw, kb = jax.random.split(key, 3)
        bound = 1.0 / (fan_in ** 0.5)   # PyTorch default Linear init range
        w = jax.random.uniform(kw, (fan_out, fan_in), jnp.float32,
                               minval=-bound, maxval=bound)
        b = jax.random.uniform(kb, (fan_out,), jnp.float32,
                               minval=-bound, maxval=bound)
        params.append((w, b))
    return params


def reference_forward(x, params):
    """Pure-JAX reference matching the PyTorch module."""
    h = x
    for i, (w, b) in enumerate(params):
        h = h @ w.T + b
        h = jnp.maximum(h, 0.0) if i < len(params) - 1 else jax.nn.sigmoid(h)
    return h


# ---------------------------------- main -----------------------------------

if __name__ == "__main__":
    key = jax.random.PRNGKey(0)
    kx, kp = jax.random.split(key)
    params = init_params(kp)

    # Small batch (single partial block), a ragged single-tile batch, and a
    # multi-step grid with a ragged tail (no wrapper-side padding anywhere).
    for batch, tile in ((16, 4096), (1000, 4096), (9000, 4096)):
        kx, sub = jax.random.split(kx)
        x = jax.random.normal(sub, (batch, 28), jnp.float32)

        out = jax.block_until_ready(model1_forward(x, params, batch_tile=tile))
        ref = reference_forward(x, params)

        assert out.shape == (batch, 1), out.shape
        assert jnp.allclose(out, ref, atol=1e-5, rtol=1e-5), \
            f"mismatch vs reference at batch={batch}, tile={tile}"

    print("KERNEL_OK")
</pallas_src>

<mosaic_0001>
module attributes {stable_mosaic.version = 11 : i64} {
  func.func @_mlp_kernel(%arg0: i32, %arg1: memref<128x28xf32, #tpu.memory_space<vmem>>, %arg2: memref<32x28xf32, #tpu.memory_space<vmem>>, %arg3: memref<32x1xf32, #tpu.memory_space<vmem>>, %arg4: memref<64x32xf32, #tpu.memory_space<vmem>>, %arg5: memref<64x1xf32, #tpu.memory_space<vmem>>, %arg6: memref<24x64xf32, #tpu.memory_space<vmem>>, %arg7: memref<24x1xf32, #tpu.memory_space<vmem>>, %arg8: memref<12x24xf32, #tpu.memory_space<vmem>>, %arg9: memref<12x1xf32, #tpu.memory_space<vmem>>, %arg10: memref<6x12xf32, #tpu.memory_space<vmem>>, %arg11: memref<6x1xf32, #tpu.memory_space<vmem>>, %arg12: memref<6x1xf32, #tpu.memory_space<vmem>>, %arg13: memref<1x1xf32, #tpu.memory_space<vmem>>, %arg14: memref<1x128xf32, #tpu.memory_space<vmem>>) attributes {dimension_semantics = [#tpu.dimension_semantics<parallel>], iteration_bounds = array<i64: 1>, scalar_prefetch = 0 : i64, scratch_operands = 0 : i64, tpu.core_type = #tpu.core_type<tc>, window_params = [{transform_indices = @transform_0, window_bounds = array<i64: 128, 28>}, {pipeline_mode = #tpu.pipeline_mode<synchronous>, transform_indices = @transform_1, window_bounds = array<i64: 32, 28>}, {pipeline_mode = #tpu.pipeline_mode<synchronous>, transform_indices = @transform_2, window_bounds = array<i64: 32, 1>}, {pipeline_mode = #tpu.pipeline_mode<synchronous>, transform_indices = @transform_3, window_bounds = array<i64: 64, 32>}, {pipeline_mode = #tpu.pipeline_mode<synchronous>, transform_indices = @transform_4, window_bounds = array<i64: 64, 1>}, {pipeline_mode = #tpu.pipeline_mode<synchronous>, transform_indices = @transform_5, window_bounds = array<i64: 24, 64>}, {pipeline_mode = #tpu.pipeline_mode<synchronous>, transform_indices = @transform_6, window_bounds = array<i64: 24, 1>}, {pipeline_mode = #tpu.pipeline_mode<synchronous>, transform_indices = @transform_7, window_bounds = array<i64: 12, 24>}, {pipeline_mode = #tpu.pipeline_mode<synchronous>, transform_indices = @transform_8, window_bounds = array<i64: 12, 1>}, {pipeline_mode = #tpu.pipeline_mode<synchronous>, transform_indices = @transform_9, window_bounds = array<i64: 6, 12>}, {pipeline_mode = #tpu.pipeline_mode<synchronous>, transform_indices = @transform_10, window_bounds = array<i64: 6, 1>}, {pipeline_mode = #tpu.pipeline_mode<synchronous>, transform_indices = @transform_11, window_bounds = array<i64: 6, 1>}, {pipeline_mode = #tpu.pipeline_mode<synchronous>, transform_indices = @transform_12, window_bounds = array<i64: 1, 1>}, {transform_indices = @transform_13, window_bounds = array<i64: 1, 128>}]} {
    %c0_i32 = arith.constant 0 : i32
    %c128_i32 = arith.constant 128 : i32
    %0 = arith.muli %c0_i32, %c128_i32 : i32
    %1 = tpu.assume_multiple %0, 128 : i32
    %2 = arith.index_cast %1 : i32 to index
    %c0 = arith.constant 0 : index
    %3 = vector.load %arg1[%2, %c0] : memref<128x28xf32, #tpu.memory_space<vmem>>, vector<128x28xf32>
    %c0_0 = arith.constant 0 : index
    %c0_1 = arith.constant 0 : index
    %4 = vector.load %arg2[%c0_0, %c0_1] : memref<32x28xf32, #tpu.memory_space<vmem>>, vector<32x28xf32>
    %cst = arith.constant dense<0.000000e+00> : vector<32x128xf32>
    %5 = tpu.matmul %4, %3, %cst {dimension_numbers = #tpu.dot_dimension_numbers<[1], [1], [0], [0], [0, 0, 1, 0], [], []>} : vector<32x28xf32>, vector<128x28xf32>, vector<32x128xf32> -> vector<32x128xf32>
    %c0_2 = arith.constant 0 : index
    %c0_3 = arith.constant 0 : index
    %6 = vector.load %arg3[%c0_2, %c0_3] : memref<32x1xf32, #tpu.memory_space<vmem>>, vector<32x1xf32>
    %7 = vector.broadcast %6 : vector<32x1xf32> to vector<32x128xf32>
    %8 = arith.addf %5, %7 : vector<32x128xf32>
    %cst_4 = arith.constant 0.000000e+00 : f32
    %9 = vector.broadcast %cst_4 : f32 to vector<32x128xf32>
    %10 = arith.maximumf %8, %9 : vector<32x128xf32>
    %c0_5 = arith.constant 0 : index
    %c0_6 = arith.constant 0 : index
    %11 = vector.load %arg4[%c0_5, %c0_6] : memref<64x32xf32, #tpu.memory_space<vmem>>, vector<64x32xf32>
    %cst_7 = arith.constant dense<0.000000e+00> : vector<64x128xf32>
    %12 = tpu.matmul %11, %10, %cst_7 {dimension_numbers = #tpu.dot_dimension_numbers<[1], [0], [0], [1], [0, 0, 1, 1], [], []>} : vector<64x32xf32>, vector<32x128xf32>, vector<64x128xf32> -> vector<64x128xf32>
    %c0_8 = arith.constant 0 : index
    %c0_9 = arith.constant 0 : index
    %13 = vector.load %arg5[%c0_8, %c0_9] : memref<64x1xf32, #tpu.memory_space<vmem>>, vector<64x1xf32>
    %14 = vector.broadcast %13 : vector<64x1xf32> to vector<64x128xf32>
    %15 = arith.addf %12, %14 : vector<64x128xf32>
    %cst_10 = arith.constant 0.000000e+00 : f32
    %16 = vector.broadcast %cst_10 : f32 to vector<64x128xf32>
    %17 = arith.maximumf %15, %16 : vector<64x128xf32>
    %c0_11 = arith.constant 0 : index
    %c0_12 = arith.constant 0 : index
    %18 = vector.load %arg6[%c0_11, %c0_12] : memref<24x64xf32, #tpu.memory_space<vmem>>, vector<24x64xf32>
    %cst_13 = arith.constant dense<0.000000e+00> : vector<24x128xf32>
    %19 = tpu.matmul %18, %17, %cst_13 {dimension_numbers = #tpu.dot_dimension_numbers<[1], [0], [0], [1], [0, 0, 1, 1], [], []>} : vector<24x64xf32>, vector<64x128xf32>, vector<24x128xf32> -> vector<24x128xf32>
    %c0_14 = arith.constant 0 : index
    %c0_15 = arith.constant 0 : index
    %20 = vector.load %arg7[%c0_14, %c0_15] : memref<24x1xf32, #tpu.memory_space<vmem>>, vector<24x1xf32>
    %21 = vector.broadcast %20 : vector<24x1xf32> to vector<24x128xf32>
    %22 = arith.addf %19, %21 : vector<24x128xf32>
    %cst_16 = arith.constant 0.000000e+00 : f32
    %23 = vector.broadcast %cst_16 : f32 to vector<24x128xf32>
    %24 = arith.maximumf %22, %23 : vector<24x128xf32>
    %c0_17 = arith.constant 0 : index
    %c0_18 = arith.constant 0 : index
    %25 = vector.load %arg8[%c0_17, %c0_18] : memref<12x24xf32, #tpu.memory_space<vmem>>, vector<12x24xf32>
    %cst_19 = arith.constant dense<0.000000e+00> : vector<12x128xf32>
    %26 = tpu.matmul %25, %24, %cst_19 {dimension_numbers = #tpu.dot_dimension_numbers<[1], [0], [0], [1], [0, 0, 1, 1], [], []>} : vector<12x24xf32>, vector<24x128xf32>, vector<12x128xf32> -> vector<12x128xf32>
    %c0_20 = arith.constant 0 : index
    %c0_21 = arith.constant 0 : index
    %27 = vector.load %arg9[%c0_20, %c0_21] : memref<12x1xf32, #tpu.memory_space<vmem>>, vector<12x1xf32>
    %28 = vector.broadcast %27 : vector<12x1xf32> to vector<12x128xf32>
    %29 = arith.addf %26, %28 : vector<12x128xf32>
    %cst_22 = arith.constant 0.000000e+00 : f32
    %30 = vector.broadcast %cst_22 : f32 to vector<12x128xf32>
    %31 = arith.maximumf %29, %30 : vector<12x128xf32>
    %c0_23 = arith.constant 0 : index
    %c0_24 = arith.constant 0 : index
    %32 = vector.load %arg10[%c0_23, %c0_24] : memref<6x12xf32, #tpu.memory_space<vmem>>, vector<6x12xf32>
    %cst_25 = arith.constant dense<0.000000e+00> : vector<6x128xf32>
    %33 = tpu.matmul %32, %31, %cst_25 {dimension_numbers = #tpu.dot_dimension_numbers<[1], [0], [0], [1], [0, 0, 1, 1], [], []>} : vector<6x12xf32>, vector<12x128xf32>, vector<6x128xf32> -> vector<6x128xf32>
    %c0_26 = arith.constant 0 : index
    %c0_27 = arith.constant 0 : index
    %34 = vector.load %arg11[%c0_26, %c0_27] : memref<6x1xf32, #tpu.memory_space<vmem>>, vector<6x1xf32>
    %35 = vector.broadcast %34 : vector<6x1xf32> to vector<6x128xf32>
    %36 = arith.addf %33, %35 : vector<6x128xf32>
    %cst_28 = arith.constant 0.000000e+00 : f32
    %37 = vector.broadcast %cst_28 : f32 to vector<6x128xf32>
    %38 = arith.maximumf %36, %37 : vector<6x128xf32>
    %c0_29 = arith.constant 0 : index
    %c0_30 = arith.constant 0 : index
    %39 = vector.load %arg12[%c0_29, %c0_30] : memref<6x1xf32, #tpu.memory_space<vmem>>, vector<6x1xf32>
    %40 = vector.broadcast %39 : vector<6x1xf32> to vector<6x128xf32>
    %41 = arith.mulf %38, %40 : vector<6x128xf32>
    %cst_31 = arith.constant dense<0.000000e+00> : vector<128xf32>
    %42 = vector.multi_reduction <add>, %41, %cst_31 [0] : vector<6x128xf32> to vector<128xf32>
    %43 = vector.shape_cast %42 : vector<128xf32> to vector<1x128xf32>
    %c0_32 = arith.constant 0 : index
    %c0_33 = arith.constant 0 : index
    %44 = vector.load %arg13[%c0_32, %c0_33] : memref<1x1xf32, #tpu.memory_space<vmem>>, vector<1x1xf32>
    %45 = vector.broadcast %44 : vector<1x1xf32> to vector<1x128xf32>
    %46 = arith.addf %43, %45 : vector<1x128xf32>
    %47 = arith.negf %46 : vector<1x128xf32>
    %48 = math.exp %47 : vector<1x128xf32>
    %cst_34 = arith.constant 1.000000e+00 : f32
    %49 = vector.broadcast %cst_34 : f32 to vector<1x128xf32>
    %50 = arith.addf %49, %48 : vector<1x128xf32>
    %51 = arith.divf %49, %50 : vector<1x128xf32>
    %c0_35 = arith.constant 0 : index
    %52 = arith.index_cast %1 : i32 to index
    %53 = vector.load %arg14[%c0_35, %52] : memref<1x128xf32, #tpu.memory_space<vmem>>, vector<1x128xf32>
    tpu.vector_store %arg14[%c0_35, %52], %51 {strides = array<i32>} : memref<1x128xf32, #tpu.memory_space<vmem>>, vector<1x128xf32>,
    %c1_i32 = arith.constant 1 : i32
    return
  }
  func.func @transform_0(%arg0: i32) -> (i32, i32) {
    %c0_i32 = arith.constant 0 : i32
    %c0_i32_0 = arith.constant 0 : i32
    return %arg0, %c0_i32 : i32, i32
  }
  func.func @transform_1(%arg0: i32) -> (i32, i32) {
    %c0_i32 = arith.constant 0 : i32
    %c0_i32_0 = arith.constant 0 : i32
    %c0_i32_1 = arith.constant 0 : i32
    return %c0_i32, %c0_i32_0 : i32, i32
  }
  func.func @transform_2(%arg0: i32) -> (i32, i32) {
    %c0_i32 = arith.constant 0 : i32
    %c0_i32_0 = arith.constant 0 : i32
    %c0_i32_1 = arith.constant 0 : i32
    return %c0_i32, %c0_i32_0 : i32, i32
  }
  func.func @transform_3(%arg0: i32) -> (i32, i32) {
    %c0_i32 = arith.constant 0 : i32
    %c0_i32_0 = arith.constant 0 : i32
    %c0_i32_1 = arith.constant 0 : i32
    return %c0_i32, %c0_i32_0 : i32, i32
  }
  func.func @transform_4(%arg0: i32) -> (i32, i32) {
    %c0_i32 = arith.constant 0 : i32
    %c0_i32_0 = arith.constant 0 : i32
    %c0_i32_1 = arith.constant 0 : i32
    return %c0_i32, %c0_i32_0 : i32, i32
  }
  func.func @transform_5(%arg0: i32) -> (i32, i32) {
    %c0_i32 = arith.constant 0 : i32
    %c0_i32_0 = arith.constant 0 : i32
    %c0_i32_1 = arith.constant 0 : i32
    return %c0_i32, %c0_i32_0 : i32, i32
  }
  func.func @transform_6(%arg0: i32) -> (i32, i32) {
    %c0_i32 = arith.constant 0 : i32
    %c0_i32_0 = arith.constant 0 : i32
    %c0_i32_1 = arith.constant 0 : i32
    return %c0_i32, %c0_i32_0 : i32, i32
  }
  func.func @transform_7(%arg0: i32) -> (i32, i32) {
    %c0_i32 = arith.constant 0 : i32
    %c0_i32_0 = arith.constant 0 : i32
    %c0_i32_1 = arith.constant 0 : i32
    return %c0_i32, %c0_i32_0 : i32, i32
  }
  func.func @transform_8(%arg0: i32) -> (i32, i32) {
    %c0_i32 = arith.constant 0 : i32
    %c0_i32_0 = arith.constant 0 : i32
    %c0_i32_1 = arith.constant 0 : i32
    return %c0_i32, %c0_i32_0 : i32, i32
  }
  func.func @transform_9(%arg0: i32) -> (i32, i32) {
    %c0_i32 = arith.constant 0 : i32
    %c0_i32_0 = arith.constant 0 : i32
    %c0_i32_1 = arith.constant 0 : i32
    return %c0_i32, %c0_i32_0 : i32, i32
  }
  func.func @transform_10(%arg0: i32) -> (i32, i32) {
    %c0_i32 = arith.constant 0 : i32
    %c0_i32_0 = arith.constant 0 : i32
    %c0_i32_1 = arith.constant 0 : i32
    return %c0_i32, %c0_i32_0 : i32, i32
  }
  func.func @transform_11(%arg0: i32) -> (i32, i32) {
    %c0_i32 = arith.constant 0 : i32
    %c0_i32_0 = arith.constant 0 : i32
    %c0_i32_1 = arith.constant 0 : i32
    return %c0_i32, %c0_i32_0 : i32, i32
  }
  func.func @transform_12(%arg0: i32) -> (i32, i32) {
    %c0_i32 = arith.constant 0 : i32
    %c0_i32_0 = arith.constant 0 : i32
    %c0_i32_1 = arith.constant 0 : i32
    return %c0_i32, %c0_i32_0 : i32, i32
  }
  func.func @transform_13(%arg0: i32) -> (i32, i32) {
    %c0_i32 = arith.constant 0 : i32
    %c0_i32_0 = arith.constant 0 : i32
    return %c0_i32, %arg0 : i32, i32
  }
}

</mosaic_0001>

<llo_original>
// kernel: tpu_custom_call.1
$region0: #{tpu_custom_call.1}
  #allocation0 [shape = 'u32[]', space=smem, size = 0x4, offset = 0x4, fixed_abs, tag = 'smem constant byte address 0x4 - core index']
  #allocation1 [shape = 'u32[144,128]{1,0:T(1,128)}', space=vmem, size = 0x12000, scoped, tag = 'internal scratch']
  #allocation2 [shape = 'f32[1,1]{1,0:T(1,128)S(1)}', space=vmem, size = 0x200, scoped, tag = 'scoped memory for tpu_custom_call.1']
  %s0 = inlined_call_operand.vmem [shape: f32[16,28], index: 0, kind: input, shape index: {}]
  %s1 = inlined_call_operand.vmem [shape: f32[32,28], index: 1, kind: input, shape index: {}]
  %s2 = inlined_call_operand.vmem [shape: f32[32,1], index: 2, kind: input, shape index: {}]
  %s3 = inlined_call_operand.vmem [shape: f32[64,32], index: 3, kind: input, shape index: {}]
  %s4 = inlined_call_operand.vmem [shape: f32[64,1], index: 4, kind: input, shape index: {}]
  %s5 = inlined_call_operand.vmem [shape: f32[24,64], index: 5, kind: input, shape index: {}]
  %s6 = inlined_call_operand.vmem [shape: f32[24,1], index: 6, kind: input, shape index: {}]
  %s7 = inlined_call_operand.vmem [shape: f32[12,24], index: 7, kind: input, shape index: {}]
  %s8 = inlined_call_operand.vmem [shape: f32[12,1], index: 8, kind: input, shape index: {}]
  %s9 = inlined_call_operand.vmem [shape: f32[6,12], index: 9, kind: input, shape index: {}]
  %s10 = inlined_call_operand.vmem [shape: f32[6,1], index: 10, kind: input, shape index: {}]
  %s11 = inlined_call_operand.vmem [shape: f32[6,1], index: 11, kind: input, shape index: {}]
  %s12 = inlined_call_operand.<no memory space> [shape: f32[1,1], index: 12, kind: input, shape index: {}]
  %s13 = inlined_call_operand.hbm [shape: f32[1,16], index: 13, kind: output, shape index: {}]
  %s14 = sld [smem:[#allocation0]]
  $region62: #{tpu_custom_call.1} parent=0
    _
  %s16 = ssub.s32 1, %s14
  %s17 = scalar_select 0, %s16, %s14
  %v18 = vstv %s12
  %19 = vst [vmem:[#allocation2] sm:$0x1] %v18
  $region1: #{tpu_custom_call.1} parent=0
    #allocation3 [shape = 'u8[512]{0}', space=vmem, size = 0x400, scoped, tag = 'output window, operand 0, single buffered']
    #allocation4 [shape = 's32[1]{0}', space=sflag, size = 0x4, scoped, tag = 'scoped memory for tpu_custom_call.1']
    %20 = vsyncpa [#allocation4], 0
    // Predicated region
    $region2: #{tpu_custom_call.1} parent=1 // pred_check
      _
    $region3: #{tpu_custom_call.1} parent=1 // pred_check_branch
      %22 = sbr.rel (0) target = $region5
    $region4: #{tpu_custom_call.1} parent=1 // pred_region
      _
    $region5: #{tpu_custom_call.1} parent=1 // pred_fallthru
      _
    // Predicated region
    $region6: #{tpu_custom_call.1} parent=1 // pred_check
      _
    $region7: #{tpu_custom_call.1} parent=1 // pred_check_branch
      %24 = sbr.rel (0) target = $region9
    $region8: #{tpu_custom_call.1} parent=1 // pred_region
      _
    $region9: #{tpu_custom_call.1} parent=1 // pred_fallthru
      _
    // Predicated region
    $region10: #{tpu_custom_call.1} parent=1 // pred_check
      _
    $region11: #{tpu_custom_call.1} parent=1 // pred_check_branch
      %26 = sbr.rel (0) target = $region13
    $region12: #{tpu_custom_call.1} parent=1 // pred_region
      _
    $region13: #{tpu_custom_call.1} parent=1 // pred_fallthru
      _
    // Predicated region
    $region14: #{tpu_custom_call.1} parent=1 // pred_check
      _
    $region15: #{tpu_custom_call.1} parent=1 // pred_check_branch
      %28 = sbr.rel (0) target = $region17
    $region16: #{tpu_custom_call.1} parent=1 // pred_region
      _
    $region17: #{tpu_custom_call.1} parent=1 // pred_fallthru
      _
    // Predicated region
    $region18: #{tpu_custom_call.1} parent=1 // pred_check
      _
    $region19: #{tpu_custom_call.1} parent=1 // pred_check_branch
      %30 = sbr.rel (0) target = $region21
    $region20: #{tpu_custom_call.1} parent=1 // pred_region
      _
    $region21: #{tpu_custom_call.1} parent=1 // pred_fallthru
      _
    // Predicated region
    $region22: #{tpu_custom_call.1} parent=1 // pred_check
      _
    $region23: #{tpu_custom_call.1} parent=1 // pred_check_branch
      %32 = sbr.rel (0) target = $region25
    $region24: #{tpu_custom_call.1} parent=1 // pred_region
      _
    $region25: #{tpu_custom_call.1} parent=1 // pred_fallthru
      _
    // Predicated region
    $region26: #{tpu_custom_call.1} parent=1 // pred_check
      _
    $region27: #{tpu_custom_call.1} parent=1 // pred_check_branch
      %34 = sbr.rel (0) target = $region29
    $region28: #{tpu_custom_call.1} parent=1 // pred_region
      _
    $region29: #{tpu_custom_call.1} parent=1 // pred_fallthru
      _
    // Predicated region
    $region30: #{tpu_custom_call.1} parent=1 // pred_check
      _
    $region31: #{tpu_custom_call.1} parent=1 // pred_check_branch
      %36 = sbr.rel (0) target = $region33
    $region32: #{tpu_custom_call.1} parent=1 // pred_region
      _
    $region33: #{tpu_custom_call.1} parent=1 // pred_fallthru
      _
    // Predicated region
    $region34: #{tpu_custom_call.1} parent=1 // pred_check
      _
    $region35: #{tpu_custom_call.1} parent=1 // pred_check_branch
      %38 = sbr.rel (0) target = $region37
    $region36: #{tpu_custom_call.1} parent=1 // pred_region
      _
    $region37: #{tpu_custom_call.1} parent=1 // pred_fallthru
      _
    // Predicated region
    $region38: #{tpu_custom_call.1} parent=1 // pred_check
      _
    $region39: #{tpu_custom_call.1} parent=1 // pred_check_branch
      %40 = sbr.rel (0) target = $region41
    $region40: #{tpu_custom_call.1} parent=1 // pred_region
      _
    $region41: #{tpu_custom_call.1} parent=1 // pred_fallthru
      _
    // Predicated region
    $region42: #{tpu_custom_call.1} parent=1 // pred_check
      _
    $region43: #{tpu_custom_call.1} parent=1 // pred_check_branch
      %42 = sbr.rel (0) target = $region45
    $region44: #{tpu_custom_call.1} parent=1 // pred_region
      _
    $region45: #{tpu_custom_call.1} parent=1 // pred_fallthru
      _
    // Predicated region
    $region46: #{tpu_custom_call.1} parent=1 // pred_check
      _
    $region47: #{tpu_custom_call.1} parent=1 // pred_check_branch
      %44 = sbr.rel (0) target = $region49
    $region48: #{tpu_custom_call.1} parent=1 // pred_region
      _
    $region49: #{tpu_custom_call.1} parent=1 // pred_fallthru
      _
    // Predicated region
    $region50: #{tpu_custom_call.1} parent=1 // pred_check
      _
    $region51: #{tpu_custom_call.1} parent=1 // pred_check_branch
      %46 = sbr.rel (0) target = $region53
    $region52: #{tpu_custom_call.1} parent=1 // pred_region
      _
    $region53: #{tpu_custom_call.1} parent=1 // pred_fallthru
      _
    %v47 = vld [vmem:[%s0] sm:$0xff]
    %v48 = vld [vmem:[%s0 + $0x8] sm:$0xff]
    %v49 = vld [vmem:[%s0 + $0x10] sm:$0xff]
    %v50 = vld [vmem:[%s0 + $0x18] sm:$0xff]
    %v51 = vld [vmem:[%s0 + $0x20] sm:$0xff]
    %v52 = vld [vmem:[%s0 + $0x28] sm:$0xff]
    %v53 = vld [vmem:[%s0 + $0x30] sm:$0xff]
    %v54 = vld [vmem:[%s0 + $0x38] sm:$0xff]
    %v55 = vld [vmem:[%s0 + $0x40] sm:$0xff]
    %v56 = vld [vmem:[%s0 + $0x48] sm:$0xff]
    %v57 = vld [vmem:[%s0 + $0x50] sm:$0xff]
    %v58 = vld [vmem:[%s0 + $0x58] sm:$0xff]
    %v59 = vld [vmem:[%s0 + $0x60] sm:$0xff]
    %v60 = vld [vmem:[%s0 + $0x68] sm:$0xff]
    %v61 = vld [vmem:[%s0 + $0x70] sm:$0xff]
    %v62 = vld [vmem:[%s0 + $0x78] sm:$0xff]
    %v63 = vld [vmem:[%s1] sm:$0xff]
    %v64 = vld [vmem:[%s1 + $0x8] sm:$0xff]
    %v65 = vld [vmem:[%s1 + $0x10] sm:$0xff]
    %v66 = vld [vmem:[%s1 + $0x18] sm:$0xff]
    %v67 = vld [vmem:[%s2] sm:$0xff]
    %v68 = vld [vmem:[%s2 + $0x8] sm:$0xff]
    %v69 = vld [vmem:[%s2 + $0x10] sm:$0xff]
    %v70 = vld [vmem:[%s2 + $0x18] sm:$0xff]
    %72 = vset.pattern.permute.xlu0 0
    %73 = vperm.xlu0 %72, %v67
    %v74 = vpop.permute.xlu0 %73
    %77 = vset.pattern.permute.xlu0 0
    %78 = vperm.xlu0 %77, %v68
    %v79 = vpop.permute.xlu0 %78
    %82 = vset.pattern.permute.xlu0 0
    %83 = vperm.xlu0 %82, %v69
    %v84 = vpop.permute.xlu0 %83
    %87 = vset.pattern.permute.xlu0 0
    %88 = vperm.xlu0 %87, %v70
    %v89 = vpop.permute.xlu0 %88
    %vm91 = vcmask 228352
    %v93 = vsel %vm91, %v63, 0
    %v96 = vsel %vm91, %v64, 0
    %v99 = vsel %vm91, %v65, 0
    %v102 = vsel %vm91, %v66, 0
    %v105 = vsel %vm91, %v47, 0
    %v108 = vsel %vm91, %v48, 0
    %v111 = vsel %vm91, %v49, 0
    %v114 = vsel %vm91, %v50, 0
    %v117 = vsel %vm91, %v51, 0
    %v120 = vsel %vm91, %v52, 0
    %v123 = vsel %vm91, %v53, 0
    %v126 = vsel %vm91, %v54, 0
    %v129 = vsel %vm91, %v55, 0
    %v132 = vsel %vm91, %v56, 0
    %v135 = vsel %vm91, %v57, 0
    %v138 = vsel %vm91, %v58, 0
    %v141 = vsel %vm91, %v59, 0
    %v144 = vsel %vm91, %v60, 0
    %v147 = vsel %vm91, %v61, 0
    %v150 = vsel %vm91, %v62, 0
    %152 = vmatprep.subr.mxu0 0.0
    %153 = vmatpush1.xpose.msra.mxu0 %v150
    %154 = vmatprep.subr.mxu0 0.0
    %155 = vmatpush1.xpose.msra.mxu0 %v147
    %156 = vmatprep.subr.mxu0 0.0
    %157 = vmatpush1.xpose.msra.mxu0 %v144
    %158 = vmatprep.subr.mxu0 0.0
    %159 = vmatpush1.xpose.msra.mxu0 %v141
    %160 = vmatprep.subr.mxu0 0.0
    %161 = vmatpush1.xpose.msra.mxu0 %v138
    %162 = vmatprep.subr.mxu0 0.0
    %163 = vmatpush1.xpose.msra.mxu0 %v135
    %164 = vmatprep.subr.mxu0 0.0
    %165 = vmatpush1.xpose.msra.mxu0 %v132
    %166 = vmatprep.subr.mxu0 0.0
    %167 = vmatpush1.xpose.msra.mxu0 %v129
    %168 = vmatprep.subr.mxu0 0.0
    %169 = vmatpush1.xpose.msra.mxu0 %v126
    %170 = vmatprep.subr.mxu0 0.0
    %171 = vmatpush1.xpose.msra.mxu0 %v123
    %172 = vmatprep.subr.mxu0 0.0
    %173 = vmatpush1.xpose.msra.mxu0 %v120
    %174 = vmatprep.subr.mxu0 0.0
    %175 = vmatpush1.xpose.msra.mxu0 %v117
    %176 = vmatprep.subr.mxu0 0.0
    %177 = vmatpush1.xpose.msra.mxu0 %v114
    %178 = vmatprep.subr.mxu0 0.0
    %179 = vmatpush1.xpose.msra.mxu0 %v111
    %180 = vmatprep.subr.mxu0 0.0
    %181 = vmatpush1.xpose.msra.mxu0 %v108
    %182 = vmatprep.subr.mxu0 0.0
    %183 = vmatpush1.xpose.msra.mxu0 %v105
    %184 = vmatprep.subr.mxu0 0.0
    %185 = vmatpush2.xpose.msra.mxu0 0.0
    %186 = vmatprep.subr.mxu0 0.0
    %187 = vmatpush2.xpose.msra.mxu0 0.0
    %188 = vmatprep.subr.mxu0 0.0
    %189 = vmatpush2.xpose.msra.mxu0 0.0
    %190 = vmatprep.subr.mxu0 0.0
    %191 = vmatpush2.xpose.msra.mxu0 0.0
    %192 = vmatprep.subr.mxu0 0.0
    %193 = vmatpush2.xpose.msra.mxu0 0.0
    %194 = vmatprep.subr.mxu0 0.0
    %195 = vmatpush2.xpose.msra.mxu0 0.0
    %196 = vmatprep.subr.mxu0 0.0
    %197 = vmatpush2.xpose.msra.mxu0 0.0
    %198 = vmatprep.subr.mxu0 0.0
    %199 = vmatpush2.xpose.msra.mxu0 0.0
    %200 = vmatprep.subr.mxu0 0.0
    %201 = vmatpush2.xpose.msra.mxu0 0.0
    %202 = vmatprep.subr.mxu0 0.0
    %203 = vmatpush2.xpose.msra.mxu0 0.0
    %204 = vmatprep.subr.mxu0 0.0
    %205 = vmatpush2.xpose.msra.mxu0 0.0
    %206 = vmatprep.subr.mxu0 0.0
    %207 = vmatpush2.xpose.msra.mxu0 0.0
    %208 = vmatprep.subr.mxu0 0.0
    %209 = vmatpush2.xpose.msra.mxu0 0.0
    %210 = vmatprep.subr.mxu0 0.0
    %211 = vmatpush2.xpose.msra.mxu0 0.0
    %212 = vmatprep.subr.mxu0 0.0
    %213 = vmatpush2.xpose.msra.mxu0 0.0
    %214 = vmatprep.subr.mxu0 0.0
    %215 = vmatpush2.xpose.msra.mxu0 0.0
    %216 = vmatprep.mubr.f32.mxu0 0.0
    %217 = vmatmul.mubr.f32.gmra.mxu0 %v93
    %v218 = vpop.f32.mrf.mxu0
    %v219 = vadd.f32 %v74, %v218
    %v220 = vpop.f32.mrf.mxu0
    %221 = vmatprep.mubr.f32.mxu0 0.0
    %222 = vmatmul.mubr.f32.gmra.mxu0 %v96
    %v223 = vpop.f32.mrf.mxu0
    %v224 = vadd.f32 %v79, %v223
    %v225 = vpop.f32.mrf.mxu0
    %226 = vmatprep.mubr.f32.mxu0 0.0
    %227 = vmatmul.mubr.f32.gmra.mxu0 %v99
    %v228 = vpop.f32.mrf.mxu0
    %v229 = vadd.f32 %v84, %v228
    %v230 = vpop.f32.mrf.mxu0
    %231 = vmatprep.mubr.f32.mxu0 0.0
    %232 = vmatmul.mubr.f32.gmra.mxu0 %v102
    %v233 = vpop.f32.mrf.mxu0
    %v234 = vadd.f32 %v89, %v233
    %v235 = vpop.f32.mrf.mxu0
    %236 = vdwg.mxu0
    %v237 = vmax.f32 %v219, 0.0
    %v238 = vmax.f32 %v224, 0.0
    %v239 = vmax.f32 %v229, 0.0
    %v240 = vmax.f32 %v234, 0.0
    %v241 = vld [vmem:[%s3] sm:$0xff]
    %v242 = vld [vmem:[%s3 + $0x8] sm:$0xff]
    %v243 = vld [vmem:[%s3 + $0x10] sm:$0xff]
    %v244 = vld [vmem:[%s3 + $0x18] sm:$0xff]
    %v245 = vld [vmem:[%s3 + $0x20] sm:$0xff]
    %v246 = vld [vmem:[%s3 + $0x28] sm:$0xff]
    %v247 = vld [vmem:[%s3 + $0x30] sm:$0xff]
    %v248 = vld [vmem:[%s3 + $0x38] sm:$0xff]
    %v249 = vld [vmem:[%s4] sm:$0xff]
    %v250 = vld [vmem:[%s4 + $0x8] sm:$0xff]
    %v251 = vld [vmem:[%s4 + $0x10] sm:$0xff]
    %v252 = vld [vmem:[%s4 + $0x18] sm:$0xff]
    %v253 = vld [vmem:[%s4 + $0x20] sm:$0xff]
    %v254 = vld [vmem:[%s4 + $0x28] sm:$0xff]
    %v255 = vld [vmem:[%s4 + $0x30] sm:$0xff]
    %v256 = vld [vmem:[%s4 + $0x38] sm:$0xff]
    %258 = vset.pattern.permute.xlu0 0
    %259 = vperm.xlu0 %258, %v249
    %v260 = vpop.permute.xlu0 %259
    %263 = vset.pattern.permute.xlu0 0
    %264 = vperm.xlu0 %263, %v250
    %v265 = vpop.permute.xlu0 %264
    %268 = vset.pattern.permute.xlu0 0
    %269 = vperm.xlu0 %268, %v251
    %v270 = vpop.permute.xlu0 %269
    %273 = vset.pattern.permute.xlu0 0
    %274 = vperm.xlu0 %273, %v252
    %v275 = vpop.permute.xlu0 %274
    %278 = vset.pattern.permute.xlu0 0
    %279 = vperm.xlu0 %278, %v253
    %v280 = vpop.permute.xlu0 %279
    %283 = vset.pattern.permute.xlu0 0
    %284 = vperm.xlu0 %283, %v254
    %v285 = vpop.permute.xlu0 %284
    %288 = vset.pattern.permute.xlu0 0
    %289 = vperm.xlu0 %288, %v255
    %v290 = vpop.permute.xlu0 %289
    %293 = vset.pattern.permute.xlu0 0
    %294 = vperm.xlu0 %293, %v256
    %v295 = vpop.permute.xlu0 %294
    %vm297 = vcmask 261120
    %v299 = vsel %vm297, %v241, 0
    %v302 = vsel %vm297, %v242, 0
    %v305 = vsel %vm297, %v243, 0
    %v308 = vsel %vm297, %v244, 0
    %v311 = vsel %vm297, %v245, 0
    %v314 = vsel %vm297, %v246, 0
    %v317 = vsel %vm297, %v247, 0
    %v320 = vsel %vm297, %v248, 0
    %322 = vmatprep.subr.mxu0 0.0
    %323 = vmatpush1.msra.mxu0 0.0
    %324 = vmatprep.subr.mxu0 0.0
    %325 = vmatpush1.msra.mxu0 0.0
    %326 = vmatprep.subr.mxu0 0.0
    %327 = vmatpush1.msra.mxu0 0.0
    %328 = vmatprep.subr.mxu0 0.0
    %329 = vmatpush1.msra.mxu0 0.0
    %330 = vmatprep.subr.mxu0 0.0
    %331 = vmatpush1.msra.mxu0 0.0
    %332 = vmatprep.subr.mxu0 0.0
    %333 = vmatpush1.msra.mxu0 0.0
    %334 = vmatprep.subr.mxu0 0.0
    %335 = vmatpush1.msra.mxu0 0.0
    %336 = vmatprep.subr.mxu0 0.0
    %337 = vmatpush1.msra.mxu0 0.0
    %338 = vmatprep.subr.mxu0 0.0
    %339 = vmatpush1.msra.mxu0 0.0
    %340 = vmatprep.subr.mxu0 0.0
    %341 = vmatpush1.msra.mxu0 0.0
    %342 = vmatprep.subr.mxu0 0.0
    %343 = vmatpush1.msra.mxu0 0.0
    %344 = vmatprep.subr.mxu0 0.0
    %345 = vmatpush1.msra.mxu0 0.0
    %346 = vmatprep.subr.mxu0 0.0
    %347 = vmatpush1.msra.mxu0 %v240
    %348 = vmatprep.subr.mxu0 0.0
    %349 = vmatpush1.msra.mxu0 %v239
    %350 = vmatprep.subr.mxu0 0.0
    %351 = vmatpush1.msra.mxu0 %v238
    %352 = vmatprep.subr.mxu0 0.0
    %353 = vmatpush1.msra.mxu0 %v237
    %354 = vmatprep.subr.mxu0 0.0
    %355 = vmatpush2.msra.mxu0 0.0
    %356 = vmatprep.subr.mxu0 0.0
    %357 = vmatpush2.msra.mxu0 0.0
    %358 = vmatprep.subr.mxu0 0.0
    %359 = vmatpush2.msra.mxu0 0.0
    %360 = vmatprep.subr.mxu0 0.0
    %361 = vmatpush2.msra.mxu0 0.0
    %362 = vmatprep.subr.mxu0 0.0
    %363 = vmatpush2.msra.mxu0 0.0
    %364 = vmatprep.subr.mxu0 0.0
    %365 = vmatpush2.msra.mxu0 0.0
    %366 = vmatprep.subr.mxu0 0.0
    %367 = vmatpush2.msra.mxu0 0.0
    %368 = vmatprep.subr.mxu0 0.0
    %369 = vmatpush2.msra.mxu0 0.0
    %370 = vmatprep.subr.mxu0 0.0
    %371 = vmatpush2.msra.mxu0 0.0
    %372 = vmatprep.subr.mxu0 0.0
    %373 = vmatpush2.msra.mxu0 0.0
    %374 = vmatprep.subr.mxu0 0.0
    %375 = vmatpush2.msra.mxu0 0.0
    %376 = vmatprep.subr.mxu0 0.0
    %377 = vmatpush2.msra.mxu0 0.0
    %378 = vmatprep.subr.mxu0 0.0
    %379 = vmatpush2.msra.mxu0 0.0
    %380 = vmatprep.subr.mxu0 0.0
    %381 = vmatpush2.msra.mxu0 0.0
    %382 = vmatprep.subr.mxu0 0.0
    %383 = vmatpush2.msra.mxu0 0.0
    %384 = vmatprep.subr.mxu0 0.0
    %385 = vmatpush2.msra.mxu0 0.0
    %386 = vmatprep.mubr.f32.mxu0 0.0
    %387 = vmatmul.mubr.f32.gmra.mxu0 %v299
    %v388 = vpop.f32.mrf.mxu0
    %v389 = vadd.f32 %v260, %v388
    %v390 = vpop.f32.mrf.mxu0
    %391 = vmatprep.mubr.f32.mxu0 0.0
    %392 = vmatmul.mubr.f32.gmra.mxu0 %v302
    %v393 = vpop.f32.mrf.mxu0
    %v394 = vadd.f32 %v265, %v393
    %v395 = vpop.f32.mrf.mxu0
    %396 = vmatprep.mubr.f32.mxu0 0.0
    %397 = vmatmul.mubr.f32.gmra.mxu0 %v305
    %v398 = vpop.f32.mrf.mxu0
    %v399 = vadd.f32 %v270, %v398
    %v400 = vpop.f32.mrf.mxu0
    %401 = vmatprep.mubr.f32.mxu0 0.0
    %402 = vmatmul.mubr.f32.gmra.mxu0 %v308
    %v403 = vpop.f32.mrf.mxu0
    %v404 = vadd.f32 %v275, %v403
    %v405 = vpop.f32.mrf.mxu0
    %406 = vmatprep.mubr.f32.mxu0 0.0
    %407 = vmatmul.mubr.f32.gmra.mxu0 %v311
    %v408 = vpop.f32.mrf.mxu0
    %v409 = vadd.f32 %v280, %v408
    %v410 = vpop.f32.mrf.mxu0
    %411 = vmatprep.mubr.f32.mxu0 0.0
    %412 = vmatmul.mubr.f32.gmra.mxu0 %v314
    %v413 = vpop.f32.mrf.mxu0
    %v414 = vadd.f32 %v285, %v413
    %v415 = vpop.f32.mrf.mxu0
    %416 = vmatprep.mubr.f32.mxu0 0.0
    %417 = vmatmul.mubr.f32.gmra.mxu0 %v317
    %v418 = vpop.f32.mrf.mxu0
    %v419 = vadd.f32 %v290, %v418
    %v420 = vpop.f32.mrf.mxu0
    %421 = vmatprep.mubr.f32.mxu0 0.0
    %422 = vmatmul.mubr.f32.gmra.mxu0 %v320
    %v423 = vpop.f32.mrf.mxu0
    %v424 = vadd.f32 %v295, %v423
    %v425 = vpop.f32.mrf.mxu0
    %426 = vdwg.mxu0
    %v427 = vmax.f32 %v389, 0.0
    %v428 = vmax.f32 %v394, 0.0
    %v429 = vmax.f32 %v399, 0.0
    %v430 = vmax.f32 %v404, 0.0
    %v431 = vmax.f32 %v409, 0.0
    %v432 = vmax.f32 %v414, 0.0
    %v433 = vmax.f32 %v419, 0.0
    %v434 = vmax.f32 %v424, 0.0
    %v435 = vld [vmem:[%s5] sm:$0xff]
    %v436 = vld [vmem:[%s5 + $0x8] sm:$0xff]
    %v437 = vld [vmem:[%s5 + $0x10] sm:$0xff]
    %v438 = vld [vmem:[%s6] sm:$0xff]
    %v439 = vld [vmem:[%s6 + $0x8] sm:$0xff]
    %v440 = vld [vmem:[%s6 + $0x10] sm:$0xff]
    %442 = vset.pattern.permute.xlu0 0
    %443 = vperm.xlu0 %442, %v438
    %v444 = vpop.permute.xlu0 %443
    %447 = vset.pattern.permute.xlu0 0
    %448 = vperm.xlu0 %447, %v439
    %v449 = vpop.permute.xlu0 %448
    %452 = vset.pattern.permute.xlu0 0
    %453 = vperm.xlu0 %452, %v440
    %v454 = vpop.permute.xlu0 %453
    %vm456 = vcmask 523264
    %v458 = vsel %vm456, %v435, 0
    %v461 = vsel %vm456, %v436, 0
    %v464 = vsel %vm456, %v437, 0
    %466 = vmatprep.subr.mxu0 0.0
    %467 = vmatpush1.msra.mxu0 0.0
    %468 = vmatprep.subr.mxu0 0.0
    %469 = vmatpush1.msra.mxu0 0.0
    %470 = vmatprep.subr.mxu0 0.0
    %471 = vmatpush1.msra.mxu0 0.0
    %472 = vmatprep.subr.mxu0 0.0
    %473 = vmatpush1.msra.mxu0 0.0
    %474 = vmatprep.subr.mxu0 0.0
    %475 = vmatpush1.msra.mxu0 0.0
    %476 = vmatprep.subr.mxu0 0.0
    %477 = vmatpush1.msra.mxu0 0.0
    %478 = vmatprep.subr.mxu0 0.0
    %479 = vmatpush1.msra.mxu0 0.0
    %480 = vmatprep.subr.mxu0 0.0
    %481 = vmatpush1.msra.mxu0 0.0
    %482 = vmatprep.subr.mxu0 0.0
    %483 = vmatpush1.msra.mxu0 %v434
    %484 = vmatprep.subr.mxu0 0.0
    %485 = vmatpush1.msra.mxu0 %v433
    %486 = vmatprep.subr.mxu0 0.0
    %487 = vmatpush1.msra.mxu0 %v432
    %488 = vmatprep.subr.mxu0 0.0
    %489 = vmatpush1.msra.mxu0 %v431
    %490 = vmatprep.subr.mxu0 0.0
    %491 = vmatpush1.msra.mxu0 %v430
    %492 = vmatprep.subr.mxu0 0.0
    %493 = vmatpush1.msra.mxu0 %v429
    %494 = vmatprep.subr.mxu0 0.0
    %495 = vmatpush1.msra.mxu0 %v428
    %496 = vmatprep.subr.mxu0 0.0
    %497 = vmatpush1.msra.mxu0 %v427
    %498 = vmatprep.subr.mxu0 0.0
    %499 = vmatpush2.msra.mxu0 0.0
    %500 = vmatprep.subr.mxu0 0.0
    %501 = vmatpush2.msra.mxu0 0.0
    %502 = vmatprep.subr.mxu0 0.0
    %503 = vmatpush2.msra.mxu0 0.0
    %504 = vmatprep.subr.mxu0 0.0
    %505 = vmatpush2.msra.mxu0 0.0
    %506 = vmatprep.subr.mxu0 0.0
    %507 = vmatpush2.msra.mxu0 0.0
    %508 = vmatprep.subr.mxu0 0.0
    %509 = vmatpush2.msra.mxu0 0.0
    %510 = vmatprep.subr.mxu0 0.0
    %511 = vmatpush2.msra.mxu0 0.0
    %512 = vmatprep.subr.mxu0 0.0
    %513 = vmatpush2.msra.mxu0 0.0
    %514 = vmatprep.subr.mxu0 0.0
    %515 = vmatpush2.msra.mxu0 0.0
    %516 = vmatprep.subr.mxu0 0.0
    %517 = vmatpush2.msra.mxu0 0.0
    %518 = vmatprep.subr.mxu0 0.0
    %519 = vmatpush2.msra.mxu0 0.0
    %520 = vmatprep.subr.mxu0 0.0
    %521 = vmatpush2.msra.mxu0 0.0
    %522 = vmatprep.subr.mxu0 0.0
    %523 = vmatpush2.msra.mxu0 0.0
    %524 = vmatprep.subr.mxu0 0.0
    %525 = vmatpush2.msra.mxu0 0.0
    %526 = vmatprep.subr.mxu0 0.0
    %527 = vmatpush2.msra.mxu0 0.0
    %528 = vmatprep.subr.mxu0 0.0
    %529 = vmatpush2.msra.mxu0 0.0
    %530 = vmatprep.mubr.f32.mxu0 0.0
    %531 = vmatmul.mubr.f32.gmra.mxu0 %v458
    %v532 = vpop.f32.mrf.mxu0
    %v533 = vadd.f32 %v444, %v532
    %v534 = vpop.f32.mrf.mxu0
    %535 = vmatprep.mubr.f32.mxu0 0.0
    %536 = vmatmul.mubr.f32.gmra.mxu0 %v461
    %v537 = vpop.f32.mrf.mxu0
    %v538 = vadd.f32 %v449, %v537
    %v539 = vpop.f32.mrf.mxu0
    %540 = vmatprep.mubr.f32.mxu0 0.0
    %541 = vmatmul.mubr.f32.gmra.mxu0 %v464
    %v542 = vpop.f32.mrf.mxu0
    %v543 = vadd.f32 %v454, %v542
    %v544 = vpop.f32.mrf.mxu0
    %545 = vdwg.mxu0
    %v546 = vmax.f32 %v533, 0.0
    %v547 = vmax.f32 %v538, 0.0
    %v548 = vmax.f32 %v543, 0.0
    %v549 = vld [vmem:[%s7] sm:$0xff]
    %v550 = vld [vmem:[%s7 + $0x8] sm:$0xf]
    %v551 = vld [vmem:[%s8] sm:$0xff]
    %v552 = vld [vmem:[%s8 + $0x8] sm:$0xf]
    %554 = vset.pattern.permute.xlu0 0
    %555 = vperm.xlu0 %554, %v551
    %v556 = vpop.permute.xlu0 %555
    %559 = vset.pattern.permute.xlu0 0
    %560 = vperm.xlu0 %559, %v552
    %v561 = vpop.permute.xlu0 %560
    %vm563 = vcmask 195584
    %v565 = vsel %vm563, %v549, 0
    %v568 = vsel %vm563, %v550, 0
    %570 = vmatprep.subr.mxu0 0.0
    %571 = vmatpush1.msra.mxu0 0.0
    %572 = vmatprep.subr.mxu0 0.0
    %573 = vmatpush1.msra.mxu0 0.0
    %574 = vmatprep.subr.mxu0 0.0
    %575 = vmatpush1.msra.mxu0 0.0
    %576 = vmatprep.subr.mxu0 0.0
    %577 = vmatpush1.msra.mxu0 0.0
    %578 = vmatprep.subr.mxu0 0.0
    %579 = vmatpush1.msra.mxu0 0.0
    %580 = vmatprep.subr.mxu0 0.0
    %581 = vmatpush1.msra.mxu0 0.0
    %582 = vmatprep.subr.mxu0 0.0
    %583 = vmatpush1.msra.mxu0 0.0
    %584 = vmatprep.subr.mxu0 0.0
    %585 = vmatpush1.msra.mxu0 0.0
    %586 = vmatprep.subr.mxu0 0.0
    %587 = vmatpush1.msra.mxu0 0.0
    %588 = vmatprep.subr.mxu0 0.0
    %589 = vmatpush1.msra.mxu0 0.0
    %590 = vmatprep.subr.mxu0 0.0
    %591 = vmatpush1.msra.mxu0 0.0
    %592 = vmatprep.subr.mxu0 0.0
    %593 = vmatpush1.msra.mxu0 0.0
    %594 = vmatprep.subr.mxu0 0.0
    %595 = vmatpush1.msra.mxu0 0.0
    %596 = vmatprep.subr.mxu0 0.0
    %597 = vmatpush1.msra.mxu0 %v548
    %598 = vmatprep.subr.mxu0 0.0
    %599 = vmatpush1.msra.mxu0 %v547
    %600 = vmatprep.subr.mxu0 0.0
    %601 = vmatpush1.msra.mxu0 %v546
    %602 = vmatprep.subr.mxu0 0.0
    %603 = vmatpush2.msra.mxu0 0.0
    %604 = vmatprep.subr.mxu0 0.0
    %605 = vmatpush2.msra.mxu0 0.0
    %606 = vmatprep.subr.mxu0 0.0
    %607 = vmatpush2.msra.mxu0 0.0
    %608 = vmatprep.subr.mxu0 0.0
    %609 = vmatpush2.msra.mxu0 0.0
    %610 = vmatprep.subr.mxu0 0.0
    %611 = vmatpush2.msra.mxu0 0.0
    %612 = vmatprep.subr.mxu0 0.0
    %613 = vmatpush2.msra.mxu0 0.0
    %614 = vmatprep.subr.mxu0 0.0
    %615 = vmatpush2.msra.mxu0 0.0
    %616 = vmatprep.subr.mxu0 0.0
    %617 = vmatpush2.msra.mxu0 0.0
    %618 = vmatprep.subr.mxu0 0.0
    %619 = vmatpush2.msra.mxu0 0.0
    %620 = vmatprep.subr.mxu0 0.0
    %621 = vmatpush2.msra.mxu0 0.0
    %622 = vmatprep.subr.mxu0 0.0
    %623 = vmatpush2.msra.mxu0 0.0
    %624 = vmatprep.subr.mxu0 0.0
    %625 = vmatpush2.msra.mxu0 0.0
    %626 = vmatprep.subr.mxu0 0.0
    %627 = vmatpush2.msra.mxu0 0.0
    %628 = vmatprep.subr.mxu0 0.0
    %629 = vmatpush2.msra.mxu0 0.0
    %630 = vmatprep.subr.mxu0 0.0
    %631 = vmatpush2.msra.mxu0 0.0
    %632 = vmatprep.subr.mxu0 0.0
    %633 = vmatpush2.msra.mxu0 0.0
    %634 = vmatprep.mubr.f32.mxu0 0.0
    %635 = vmatmul.mubr.f32.gmra.mxu0 %v565
    %v636 = vpop.f32.mrf.mxu0
    %v637 = vadd.f32 %v556, %v636
    %v638 = vpop.f32.mrf.mxu0
    %639 = vmatprep.mubr.f32.mxu0 0.0
    %640 = vmatmul.mubr.f32.gmra.mxu0 %v568
    %v641 = vpop.f32.mrf.mxu0
    %v642 = vadd.f32 %v561, %v641
    %v643 = vpop.f32.mrf.mxu0
    %644 = vdwg.mxu0
    %v645 = vmax.f32 %v637, 0.0
    %v646 = vmax.f32 %v642, 0.0
    %v647 = vld [vmem:[%s9] sm:$0x3f]
    %v648 = vld [vmem:[%s10] sm:$0x3f]
    %650 = vset.pattern.permute.xlu0 0
    %651 = vperm.xlu0 %650, %v648
    %v652 = vpop.permute.xlu0 %651
    %vm654 = vcmask 97280
    %v656 = vsel %vm654, %v647, 0
    %vm658 = vcmask 1043456
    %v660 = vsel %vm658, %v646, 0
    %662 = vmatprep.subr.mxu0 0.0
    %663 = vmatpush1.msra.mxu0 0.0
    %664 = vmatprep.subr.mxu0 0.0
    %665 = vmatpush1.msra.mxu0 0.0
    %666 = vmatprep.subr.mxu0 0.0
    %667 = vmatpush1.msra.mxu0 0.0
    %668 = vmatprep.subr.mxu0 0.0
    %669 = vmatpush1.msra.mxu0 0.0
    %670 = vmatprep.subr.mxu0 0.0
    %671 = vmatpush1.msra.mxu0 0.0
    %672 = vmatprep.subr.mxu0 0.0
    %673 = vmatpush1.msra.mxu0 0.0
    %674 = vmatprep.subr.mxu0 0.0
    %675 = vmatpush1.msra.mxu0 0.0
    %676 = vmatprep.subr.mxu0 0.0
    %677 = vmatpush1.msra.mxu0 0.0
    %678 = vmatprep.subr.mxu0 0.0
    %679 = vmatpush1.msra.mxu0 0.0
    %680 = vmatprep.subr.mxu0 0.0
    %681 = vmatpush1.msra.mxu0 0.0
    %682 = vmatprep.subr.mxu0 0.0
    %683 = vmatpush1.msra.mxu0 0.0
    %684 = vmatprep.subr.mxu0 0.0
    %685 = vmatpush1.msra.mxu0 0.0
    %686 = vmatprep.subr.mxu0 0.0
    %687 = vmatpush1.msra.mxu0 0.0
    %688 = vmatprep.subr.mxu0 0.0
    %689 = vmatpush1.msra.mxu0 0.0
    %690 = vmatprep.subr.mxu0 0.0
    %691 = vmatpush1.msra.mxu0 %v660
    %692 = vmatprep.subr.mxu0 0.0
    %693 = vmatpush1.msra.mxu0 %v645
    %694 = vmatprep.subr.mxu0 0.0
    %695 = vmatpush2.msra.mxu0 0.0
    %696 = vmatprep.subr.mxu0 0.0
    %697 = vmatpush2.msra.mxu0 0.0
    %698 = vmatprep.subr.mxu0 0.0
    %699 = vmatpush2.msra.mxu0 0.0
    %700 = vmatprep.subr.mxu0 0.0
    %701 = vmatpush2.msra.mxu0 0.0
    %702 = vmatprep.subr.mxu0 0.0
    %703 = vmatpush2.msra.mxu0 0.0
    %704 = vmatprep.subr.mxu0 0.0
    %705 = vmatpush2.msra.mxu0 0.0
    %706 = vmatprep.subr.mxu0 0.0
    %707 = vmatpush2.msra.mxu0 0.0
    %708 = vmatprep.subr.mxu0 0.0
    %709 = vmatpush2.msra.mxu0 0.0
    %710 = vmatprep.subr.mxu0 0.0
    %711 = vmatpush2.msra.mxu0 0.0
    %712 = vmatprep.subr.mxu0 0.0
    %713 = vmatpush2.msra.mxu0 0.0
    %714 = vmatprep.subr.mxu0 0.0
    %715 = vmatpush2.msra.mxu0 0.0
    %716 = vmatprep.subr.mxu0 0.0
    %717 = vmatpush2.msra.mxu0 0.0
    %718 = vmatprep.subr.mxu0 0.0
    %719 = vmatpush2.msra.mxu0 0.0
    %720 = vmatprep.subr.mxu0 0.0
    %721 = vmatpush2.msra.mxu0 0.0
    %722 = vmatprep.subr.mxu0 0.0
    %723 = vmatpush2.msra.mxu0 0.0
    %724 = vmatprep.subr.mxu0 0.0
    %725 = vmatpush2.msra.mxu0 0.0
    %726 = vmatprep.mubr.f32.mxu0 0.0
    %727 = vmatmul.mubr.f32.gmra.mxu0 %v656
    %v728 = vpop.f32.mrf.mxu0
    %v729 = vadd.f32 %v652, %v728
    %v730 = vpop.f32.mrf.mxu0
    %731 = vdwg.mxu0
    %v732 = vmax.f32 %v729, 0.0
    %v733 = vld [vmem:[%s11] sm:$0x3f]
    %735 = vset.pattern.permute.xlu0 0
    %736 = vperm.xlu0 %735, %v733
    %v737 = vpop.permute.xlu0 %736
    %v739 = vmul.f32 %v732, %v737
    %vm740 = vcmask 1045504
    %v741 = vsel %vm740, %v739, 0.0
    %v742 = vrot.slane %v741, 4
    %v743 = vadd.f32 %v741, %v742
    %v744 = vrot.slane %v743, 2
    %v745 = vadd.f32 %v743, %v744
    %v746 = vrot.slane %v745, 1
    %v747 = vadd.f32 %v745, %v746
    %v748 = vld [vmem:[#allocation2] sm:$0x1]
    %750 = vset.pattern.permute.xlu0 0
    %751 = vperm.xlu0 %750, %v748
    %v752 = vpop.permute.xlu0 %751
    %v754 = vlaneseq
    %v755 = vshrl.u32 %v754, 7
    %v756 = vsub.s32 0, %v755
    %v757 = vrot.slane %v752, %v756
    %v758 = vadd.f32 %v747, %v757
    %v759 = vxor.u32 %v758, 2147483648
    %v760 = vmul.f32 %v759, 1.442695
    %v761 = vpow.pop %v760
    %v762 = vadd.f32 %v761, 1.0
    %v763 = vrcp.pop %v762
    %v764 = vmul.f32 1.0, %v763
    %765 = vst [vmem:[#allocation3] sm:$0x1] %v764
    // Predicated region
    $region54: #{tpu_custom_call.1} parent=1 // pred_check
      _
    $region55: #{tpu_custom_call.1} parent=1 // pred_check_branch
      %767 = sbr.rel (0) target = $region57
    $region56: #{tpu_custom_call.1} parent=1 // pred_region
      %s769 = ssub.s32 16, 16
      %770 = vsyncadd [#allocation4], %s769
      %s772 = sshll.u32 [#allocation3], 4
      %s773 = int_to_ptr.vmem [resolvable:$true] %s772
      %775 = dma.vmem_to_hbm [thread:$0]  %s773, 16, %s13, [#allocation4]
    $region57: #{tpu_custom_call.1} parent=1 // pred_fallthru
      _
    // Predicated region
    $region58: #{tpu_custom_call.1} parent=1 // pred_check
      _
    $region59: #{tpu_custom_call.1} parent=1 // pred_check_branch
      %777 = sbr.rel (0) target = $region61
    $region60: #{tpu_custom_call.1} parent=1 // pred_region
      %778 = dma.done [#allocation4], 16
    $region61: #{tpu_custom_call.1} parent=1 // pred_fallthru
      _
    %779 = vsyncpa [#allocation4], 1

</llo_original>
